<compile_context>
chip_gen: v6e
topology: v6e:2x2x1
jax: 0.10.0
libtpu: 0.0.40
codegen_flags: <defaults>
</compile_context>

<pallas_src>
import jax
import jax.numpy as jnp
import numpy as np
from jax import lax
from jax.experimental import pallas as pl
from jax.experimental.pallas import tpu as pltpu


# ----------------------------------------------------------------------------
# Hardware introspection (generation-aware tiling; robust fallbacks).
# ----------------------------------------------------------------------------
def _vmem_capacity_bytes():
    try:
        return int(pltpu.get_tpu_info().vmem_capacity_bytes)
    except Exception:
        return 128 << 20   # v5e/v6e capacity; conservative default for tiling


def _num_tensorcores():
    try:
        info = pltpu.get_tpu_info()
        for attr in ("num_cores", "tensorcores_per_chip", "cores_per_chip"):
            n = getattr(info, attr, None)
            if n:
                return int(n)
    except Exception:
        pass
    try:
        kind = jax.devices()[0].device_kind.lower()
    except Exception:
        return 1
    # v4 / v5p megacore and v7x expose 2 TensorCores per device.
    return 2 if any(tag in kind for tag in ("v4", "v5p", "v7")) else 1


# ----------------------------------------------------------------------------
# Kernel: per-row (row = one (b, c) pair) statistics, streamed over lane tiles.
# ----------------------------------------------------------------------------
def _make_stats_kernel(tile_n, tiles_per_split, n_valid, needs_mask):
    def kernel(x_ref, t_ref, bce_ref, inter_ref, psum_ref, tsum_ref):
        # Accumulator init at the start of each reduction sweep (axis 1).
        @pl.when(pl.program_id(1) == 0)
        def _init():
            bce_ref[...] = jnp.zeros_like(bce_ref)
            inter_ref[...] = jnp.zeros_like(inter_ref)
            psum_ref[...] = jnp.zeros_like(psum_ref)
            tsum_ref[...] = jnp.zeros_like(tsum_ref)

        x = x_ref[...].astype(jnp.float32)
        t = t_ref[...].astype(jnp.float32)

        if needs_mask:
            blk = pl.program_id(0) * tiles_per_split + pl.program_id(1)
            col = blk * tile_n + lax.broadcasted_iota(jnp.int32, x.shape, 1)
            valid = col < n_valid
            # Pad columns behave like a hugely negative logit with target 0:
            # p -> 0, bce -> 0, so every statistic gets an exactly-0 contribution.
            x = jnp.where(valid, x, -1e30)
            t = jnp.where(valid, t, 0.0)

        # Single exp shared between sigmoid and the stable logits-form BCE:
        #   bce = max(x, 0) - t*x + log(1 + exp(-|x|))
        e = jnp.exp(-jnp.abs(x))
        r = pl.reciprocal(1.0 + e, approx=True)       # EUP approx path
        p = jnp.where(x >= 0.0, r, e * r)             # == sigmoid(x)
        bce = jnp.maximum(x, 0.0) - t * x + jnp.log(1.0 + e)

        bce_ref[...] += jnp.sum(bce, axis=-1, keepdims=True)
        inter_ref[...] += jnp.sum(p * t, axis=-1, keepdims=True)
        psum_ref[...] += jnp.sum(p, axis=-1, keepdims=True)
        tsum_ref[...] += jnp.sum(t, axis=-1, keepdims=True)

    return kernel


def _channel_stats(outputs, targets, tile_lanes=None):
    """Per-(b, c) sums [bce, intersection, sum_p, sum_t] -> 4 arrays (B*C,)."""
    B, C, H, W = outputs.shape
    R = B * C
    N = H * W

    # Free contiguous views -- no transpose, no host-side upcast.
    x2 = outputs.reshape(R, N)
    t2 = targets.reshape(R, N)

    x_item = jnp.dtype(x2.dtype).itemsize
    t_item = jnp.dtype(t2.dtype).itemsize
    itemsize = max(x_item, t_item)

    vmem_cap = _vmem_capacity_bytes()
    if tile_lanes is None:
        # ~8 MiB / input / pipeline buffer on 128-MiB-VMEM parts (v5e/v6e),
        # ~4 MiB on 64-MiB parts (v7x): 2 inputs x 2 buffers stays resident.
        per_buffer_budget = max(1 << 20, min(8 << 20, vmem_cap // 16))
        tile_lanes = max(128, per_buffer_budget // max(1, R * itemsize))

    n_pad = ((N + 127) // 128) * 128
    tile_n = min(n_pad, max(128, (tile_lanes // 128) * 128))
    n_tiles = -(-N // tile_n)               # ceil division
    needs_mask = (N % tile_n) != 0

    # Leading split axis only where a second TensorCore exists to use it.
    num_tc = _num_tensorcores()
    splits = num_tc if (num_tc > 1 and n_tiles % num_tc == 0) else 1
    tiles_per_split = n_tiles // splits

    def in_map(s, j):
        return (0, s * tiles_per_split + j)

    acc_spec = pl.BlockSpec((None, R, 1), lambda s, j: (s, 0, 0))
    acc_shape = jax.ShapeDtypeStruct((splits, R, 1), jnp.float32)

    # Explicit scoped-VMEM limit so the larger pipeline tiles are accepted on
    # every generation (v5e scoped default is only 16 MiB); never above ~3/4
    # of physical VMEM (64 MiB on v7x, 128 MiB on v5e/v6e).
    buf_bytes = 2 * R * tile_n * (x_item + t_item)     # 2-deep pipeline, 2 inputs
    vmem_limit = min(int(vmem_cap * 3 // 4), max(32 << 20, buf_bytes + (8 << 20)))

    total = R * N
    cost = pl.CostEstimate(
        flops=12 * total,
        transcendentals=3 * total,
        bytes_accessed=(x2.size * x_item + t2.size * t_item + 4 * splits * R * 4),
    )

    kernel = _make_stats_kernel(tile_n, tiles_per_split, N, needs_mask)

    bce_s, inter_s, psum_s, tsum_s = pl.pallas_call(
        kernel,
        out_shape=(acc_shape, acc_shape, acc_shape, acc_shape),
        grid_spec=pltpu.PrefetchScalarGridSpec(
            num_scalar_prefetch=0,
            grid=(splits, tiles_per_split),
            in_specs=[pl.BlockSpec((R, tile_n), in_map),
                      pl.BlockSpec((R, tile_n), in_map)],
            out_specs=(acc_spec, acc_spec, acc_spec, acc_spec),
        ),
        compiler_params=pltpu.CompilerParams(
            dimension_semantics=("parallel", "arbitrary"),
            vmem_limit_bytes=int(vmem_limit)),
        cost_estimate=cost,
    )(x2, t2)

    def _fin(a):
        return a.sum(axis=0)[:, 0]          # reduce split partials -> (B*C,)

    return _fin(bce_s), _fin(inter_s), _fin(psum_s), _fin(tsum_s)


# ----------------------------------------------------------------------------
# Loss wrapper (matches ComboSuperVisionLoss.forward for this configuration).
# ----------------------------------------------------------------------------
def combo_supervision_loss(outputs, targets, weights=None, channel_weights=None,
                           sv_weight=0.15, tile_lanes=None):
    """JAX equivalent of ComboSuperVisionLoss(weights, ...)(outputs, targets).

    ComboSuperVisionLoss.forward returns just the ComboLoss mask loss
    (sv_weight is unused on this code path).
    """
    if weights is None:
        weights = {'bce': 1.0, 'dice': 1.0, 'jaccard': 0.5,
                   'focal': 0.0, 'lovasz': 0.0}
    B, C, H, W = outputs.shape
    if channel_weights is None:
        channel_weights = (1.0,) * C
    cw = jnp.asarray(channel_weights, jnp.float32)[:C]

    bce_bc, inter_bc, psum_bc, tsum_bc = _channel_stats(outputs, targets, tile_lanes)
    # per_image=False -> per-channel reductions over batch+spatial (all sums),
    # so summing the per-(b, c) partials over B is exact.
    bce_sum = jnp.sum(bce_bc)
    inter = inter_bc.reshape(B, C).sum(axis=0)
    sum_p = psum_bc.reshape(B, C).sum(axis=0)
    sum_t = tsum_bc.reshape(B, C).sum(axis=0)

    loss = jnp.float32(0.0)

    # 'bce' -- nn.BCELoss on sigmoid(outputs) vs targets (mean over everything)
    if weights.get('bce', 0):
        loss = loss + weights['bce'] * (bce_sum / jnp.float32(B * C * H * W))

    # 'dice' -- per-channel soft dice, per_image=False, eps=1e-5
    if weights.get('dice', 0):
        eps = 1e-5
        dice_c = 1.0 - (2.0 * inter + eps) / (sum_p + sum_t + eps)
        loss = loss + weights['dice'] * jnp.sum(cw * dice_c)

    # 'jaccard' -- per-channel soft jaccard, per_image=False, eps=1e-3
    if weights.get('jaccard', 0):
        eps = 1e-3
        jac_c = 1.0 - (inter + eps) / (sum_p + sum_t - inter + eps)
        loss = loss + weights['jaccard'] * jnp.sum(cw * jac_c)

    # TODO(synk): 'lovasz' / 'focal' / 'tversky' / 'ce' sub-losses are weighted
    # 0 in this configuration and are skipped exactly as in the PyTorch loop.

    return jnp.maximum(loss, jnp.float32(1e-5))   # loss.clamp(min=1e-05)


def _reference_loss(outputs, targets, weights, channel_weights):
    """Pure-JAX reference (torch-style clamped logs) for correctness check."""
    x = outputs.astype(jnp.float32)
    t = targets.astype(jnp.float32)
    p = jax.nn.sigmoid(x)
    log_p = jnp.maximum(jnp.log(p), -100.0)
    log_1mp = jnp.maximum(jnp.log1p(-p), -100.0)
    bce = jnp.mean(-(t * log_p + (1.0 - t) * log_1mp))
    inter = jnp.sum(p * t, axis=(0, 2, 3))
    sum_p = jnp.sum(p, axis=(0, 2, 3))
    sum_t = jnp.sum(t, axis=(0, 2, 3))
    cw = jnp.asarray(channel_weights, jnp.float32)
    dice = jnp.sum(cw * (1.0 - (2.0 * inter + 1e-5) / (sum_p + sum_t + 1e-5)))
    jac = jnp.sum(cw * (1.0 - (inter + 1e-3) / (sum_p + sum_t - inter + 1e-3)))
    loss = weights['bce'] * bce + weights['dice'] * dice + weights['jaccard'] * jac
    return jnp.maximum(loss, 1e-5)


if __name__ == "__main__":
    key = jax.random.PRNGKey(0)
    k1, k2, k3, k4 = jax.random.split(key, 4)

    weights = {'bce': 1.0, 'dice': 1.0, 'jaccard': 0.5}
    cw = (1.0, 1.0, 1.0, 1.0)

    # Case 1: lane-tiled accumulator path (N = 256 -> two 128-lane tiles).
    # Targets passed as bf16 (exact for {0,1} masks) to cut HBM traffic.
    B, C, H, W = 2, 4, 16, 16
    outputs = jax.random.normal(k1, (B, C, H, W), dtype=jnp.float32)               # logits
    targets = (jax.random.uniform(k2, (B, C, H, W)) > 0.5).astype(jnp.bfloat16)    # masks

    loss = jax.block_until_ready(
        combo_supervision_loss(outputs, targets, weights, cw, tile_lanes=128))
    ref = jax.block_until_ready(_reference_loss(outputs, targets, weights, cw))
    assert loss.shape == () and bool(jnp.isfinite(loss))
    np.testing.assert_allclose(float(loss), float(ref), rtol=2e-3, atol=2e-3)

    # Case 2: non-128-divisible spatial size exercises the masked partial last
    # tile (N = 272 -> 3 lane tiles of 128, the last one masked in-kernel).
    B2, C2, H2, W2 = 2, 4, 16, 17
    outputs2 = jax.random.normal(k3, (B2, C2, H2, W2), dtype=jnp.float32)
    targets2 = (jax.random.uniform(k4, (B2, C2, H2, W2)) > 0.5).astype(jnp.float32)

    loss2 = jax.block_until_ready(
        combo_supervision_loss(outputs2, targets2, weights, cw, tile_lanes=128))
    ref2 = jax.block_until_ready(_reference_loss(outputs2, targets2, weights, cw))
    assert loss2.shape == () and bool(jnp.isfinite(loss2))
    np.testing.assert_allclose(float(loss2), float(ref2), rtol=2e-3, atol=2e-3)

    print("KERNEL_OK")
</pallas_src>

<mosaic_0001>
module attributes {stable_mosaic.version = 11 : i64} {
  func.func @kernel(%arg0: i32, %arg1: i32, %arg2: memref<8x128xf32, #tpu.memory_space<vmem>>, %arg3: memref<8x128xbf16, #tpu.memory_space<vmem>>, %arg4: memref<1x8x1xf32, #tpu.memory_space<vmem>>, %arg5: memref<1x8x1xf32, #tpu.memory_space<vmem>>, %arg6: memref<1x8x1xf32, #tpu.memory_space<vmem>>, %arg7: memref<1x8x1xf32, #tpu.memory_space<vmem>>) attributes {dimension_semantics = [#tpu.dimension_semantics<parallel>, #tpu.dimension_semantics<arbitrary>], iteration_bounds = array<i64: 1, 2>, scalar_prefetch = 0 : i64, scratch_operands = 0 : i64, tpu.core_type = #tpu.core_type<tc>, window_params = [{transform_indices = @transform_0, window_bounds = array<i64: 8, 128>}, {transform_indices = @transform_1, window_bounds = array<i64: 8, 128>}, {transform_indices = @transform_2, window_bounds = array<i64: 1, 8, 1>}, {transform_indices = @transform_3, window_bounds = array<i64: 1, 8, 1>}, {transform_indices = @transform_4, window_bounds = array<i64: 1, 8, 1>}, {transform_indices = @transform_5, window_bounds = array<i64: 1, 8, 1>}]} {
    %c0_i32 = arith.constant 0 : i32
    %0 = arith.cmpi eq, %arg1, %c0_i32 : i32
    %1 = arith.extui %0 : i1 to i32
    %c0_i32_0 = arith.constant 0 : i32
    %2 = arith.cmpi ne, %1, %c0_i32_0 : i32
    scf.if %2 {
      %cst_36 = arith.constant 0.000000e+00 : f32
      %58 = vector.broadcast %cst_36 : f32 to vector<8x1xf32>
      %c0_37 = arith.constant 0 : index
      %c0_38 = arith.constant 0 : index
      %c0_39 = arith.constant 0 : index
      %59 = vector.load %arg4[%c0_37, %c0_38, %c0_39] : memref<1x8x1xf32, #tpu.memory_space<vmem>>, vector<1x8x1xf32>
      %60 = vector.shape_cast %59 : vector<1x8x1xf32> to vector<8x1xf32>
      %61 = vector.shape_cast %58 : vector<8x1xf32> to vector<1x8x1xf32>
      tpu.vector_store %arg4[%c0_37, %c0_38, %c0_39], %61 {strides = array<i32>} : memref<1x8x1xf32, #tpu.memory_space<vmem>>, vector<1x8x1xf32>,
      %cst_40 = arith.constant 0.000000e+00 : f32
      %62 = vector.broadcast %cst_40 : f32 to vector<8x1xf32>
      %c0_41 = arith.constant 0 : index
      %c0_42 = arith.constant 0 : index
      %c0_43 = arith.constant 0 : index
      %63 = vector.load %arg5[%c0_41, %c0_42, %c0_43] : memref<1x8x1xf32, #tpu.memory_space<vmem>>, vector<1x8x1xf32>
      %64 = vector.shape_cast %63 : vector<1x8x1xf32> to vector<8x1xf32>
      %65 = vector.shape_cast %62 : vector<8x1xf32> to vector<1x8x1xf32>
      tpu.vector_store %arg5[%c0_41, %c0_42, %c0_43], %65 {strides = array<i32>} : memref<1x8x1xf32, #tpu.memory_space<vmem>>, vector<1x8x1xf32>,
      %cst_44 = arith.constant 0.000000e+00 : f32
      %66 = vector.broadcast %cst_44 : f32 to vector<8x1xf32>
      %c0_45 = arith.constant 0 : index
      %c0_46 = arith.constant 0 : index
      %c0_47 = arith.constant 0 : index
      %67 = vector.load %arg6[%c0_45, %c0_46, %c0_47] : memref<1x8x1xf32, #tpu.memory_space<vmem>>, vector<1x8x1xf32>
      %68 = vector.shape_cast %67 : vector<1x8x1xf32> to vector<8x1xf32>
      %69 = vector.shape_cast %66 : vector<8x1xf32> to vector<1x8x1xf32>
      tpu.vector_store %arg6[%c0_45, %c0_46, %c0_47], %69 {strides = array<i32>} : memref<1x8x1xf32, #tpu.memory_space<vmem>>, vector<1x8x1xf32>,
      %cst_48 = arith.constant 0.000000e+00 : f32
      %70 = vector.broadcast %cst_48 : f32 to vector<8x1xf32>
      %c0_49 = arith.constant 0 : index
      %c0_50 = arith.constant 0 : index
      %c0_51 = arith.constant 0 : index
      %71 = vector.load %arg7[%c0_49, %c0_50, %c0_51] : memref<1x8x1xf32, #tpu.memory_space<vmem>>, vector<1x8x1xf32>
      %72 = vector.shape_cast %71 : vector<1x8x1xf32> to vector<8x1xf32>
      %73 = vector.shape_cast %70 : vector<8x1xf32> to vector<1x8x1xf32>
      tpu.vector_store %arg7[%c0_49, %c0_50, %c0_51], %73 {strides = array<i32>} : memref<1x8x1xf32, #tpu.memory_space<vmem>>, vector<1x8x1xf32>,
    } else {
    }
    %c0 = arith.constant 0 : index
    %c0_1 = arith.constant 0 : index
    %3 = vector.load %arg2[%c0, %c0_1] : memref<8x128xf32, #tpu.memory_space<vmem>>, vector<8x128xf32>
    %c0_2 = arith.constant 0 : index
    %c0_3 = arith.constant 0 : index
    %4 = vector.load %arg3[%c0_2, %c0_3] : memref<8x128xbf16, #tpu.memory_space<vmem>>, vector<8x128xbf16>
    %5 = arith.extf %4 : vector<8x128xbf16> to vector<8x128xf32>
    %6 = math.absf %3 : vector<8x128xf32>
    %cst = arith.constant 0.000000e+00 : f32
    %7 = vector.broadcast %cst : f32 to vector<8x128xf32>
    %8 = arith.subf %7, %6 : vector<8x128xf32>
    %9 = math.exp %8 : vector<8x128xf32>
    %cst_4 = arith.constant 1.000000e+00 : f32
    %10 = vector.broadcast %cst_4 : f32 to vector<8x128xf32>
    %11 = arith.addf %10, %9 : vector<8x128xf32>
    %12 = tpu.reciprocal %11 {approx = true} : vector<8x128xf32> -> vector<8x128xf32>
    %cst_5 = arith.constant 0.000000e+00 : f32
    %13 = vector.broadcast %cst_5 : f32 to vector<8x128xf32>
    %14 = arith.cmpf oge, %3, %13 : vector<8x128xf32>
    %15 = arith.mulf %9, %12 : vector<8x128xf32>
    %16 = arith.select %14, %12, %15 : vector<8x128xi1>, vector<8x128xf32>
    %cst_6 = arith.constant 0.000000e+00 : f32
    %17 = vector.broadcast %cst_6 : f32 to vector<8x128xf32>
    %18 = arith.maximumf %3, %17 : vector<8x128xf32>
    %19 = arith.mulf %5, %3 : vector<8x128xf32>
    %20 = arith.subf %18, %19 : vector<8x128xf32>
    %cst_7 = arith.constant 1.000000e+00 : f32
    %21 = vector.broadcast %cst_7 : f32 to vector<8x128xf32>
    %22 = arith.addf %21, %9 : vector<8x128xf32>
    %23 = math.log %22 : vector<8x128xf32>
    %24 = arith.addf %20, %23 : vector<8x128xf32>
    %c0_8 = arith.constant 0 : index
    %c0_9 = arith.constant 0 : index
    %c0_10 = arith.constant 0 : index
    %25 = vector.load %arg4[%c0_8, %c0_9, %c0_10] : memref<1x8x1xf32, #tpu.memory_space<vmem>>, vector<1x8x1xf32>
    %26 = vector.shape_cast %25 : vector<1x8x1xf32> to vector<8x1xf32>
    %cst_11 = arith.constant dense<0.000000e+00> : vector<8xf32>
    %27 = vector.multi_reduction <add>, %24, %cst_11 [1] : vector<8x128xf32> to vector<8xf32>
    %28 = vector.shape_cast %27 : vector<8xf32> to vector<8x1xf32>
    %29 = arith.addf %26, %28 : vector<8x1xf32>
    %c0_12 = arith.constant 0 : index
    %c0_13 = arith.constant 0 : index
    %c0_14 = arith.constant 0 : index
    %30 = vector.load %arg4[%c0_12, %c0_13, %c0_14] : memref<1x8x1xf32, #tpu.memory_space<vmem>>, vector<1x8x1xf32>
    %31 = vector.shape_cast %30 : vector<1x8x1xf32> to vector<8x1xf32>
    %32 = vector.shape_cast %29 : vector<8x1xf32> to vector<1x8x1xf32>
    tpu.vector_store %arg4[%c0_12, %c0_13, %c0_14], %32 {strides = array<i32>} : memref<1x8x1xf32, #tpu.memory_space<vmem>>, vector<1x8x1xf32>,
    %c0_15 = arith.constant 0 : index
    %c0_16 = arith.constant 0 : index
    %c0_17 = arith.constant 0 : index
    %33 = vector.load %arg5[%c0_15, %c0_16, %c0_17] : memref<1x8x1xf32, #tpu.memory_space<vmem>>, vector<1x8x1xf32>
    %34 = vector.shape_cast %33 : vector<1x8x1xf32> to vector<8x1xf32>
    %35 = arith.mulf %16, %5 : vector<8x128xf32>
    %cst_18 = arith.constant dense<0.000000e+00> : vector<8xf32>
    %36 = vector.multi_reduction <add>, %35, %cst_18 [1] : vector<8x128xf32> to vector<8xf32>
    %37 = vector.shape_cast %36 : vector<8xf32> to vector<8x1xf32>
    %38 = arith.addf %34, %37 : vector<8x1xf32>
    %c0_19 = arith.constant 0 : index
    %c0_20 = arith.constant 0 : index
    %c0_21 = arith.constant 0 : index
    %39 = vector.load %arg5[%c0_19, %c0_20, %c0_21] : memref<1x8x1xf32, #tpu.memory_space<vmem>>, vector<1x8x1xf32>
    %40 = vector.shape_cast %39 : vector<1x8x1xf32> to vector<8x1xf32>
    %41 = vector.shape_cast %38 : vector<8x1xf32> to vector<1x8x1xf32>
    tpu.vector_store %arg5[%c0_19, %c0_20, %c0_21], %41 {strides = array<i32>} : memref<1x8x1xf32, #tpu.memory_space<vmem>>, vector<1x8x1xf32>,
    %c0_22 = arith.constant 0 : index
    %c0_23 = arith.constant 0 : index
    %c0_24 = arith.constant 0 : index
    %42 = vector.load %arg6[%c0_22, %c0_23, %c0_24] : memref<1x8x1xf32, #tpu.memory_space<vmem>>, vector<1x8x1xf32>
    %43 = vector.shape_cast %42 : vector<1x8x1xf32> to vector<8x1xf32>
    %cst_25 = arith.constant dense<0.000000e+00> : vector<8xf32>
    %44 = vector.multi_reduction <add>, %16, %cst_25 [1] : vector<8x128xf32> to vector<8xf32>
    %45 = vector.shape_cast %44 : vector<8xf32> to vector<8x1xf32>
    %46 = arith.addf %43, %45 : vector<8x1xf32>
    %c0_26 = arith.constant 0 : index
    %c0_27 = arith.constant 0 : index
    %c0_28 = arith.constant 0 : index
    %47 = vector.load %arg6[%c0_26, %c0_27, %c0_28] : memref<1x8x1xf32, #tpu.memory_space<vmem>>, vector<1x8x1xf32>
    %48 = vector.shape_cast %47 : vector<1x8x1xf32> to vector<8x1xf32>
    %49 = vector.shape_cast %46 : vector<8x1xf32> to vector<1x8x1xf32>
    tpu.vector_store %arg6[%c0_26, %c0_27, %c0_28], %49 {strides = array<i32>} : memref<1x8x1xf32, #tpu.memory_space<vmem>>, vector<1x8x1xf32>,
    %c0_29 = arith.constant 0 : index
    %c0_30 = arith.constant 0 : index
    %c0_31 = arith.constant 0 : index
    %50 = vector.load %arg7[%c0_29, %c0_30, %c0_31] : memref<1x8x1xf32, #tpu.memory_space<vmem>>, vector<1x8x1xf32>
    %51 = vector.shape_cast %50 : vector<1x8x1xf32> to vector<8x1xf32>
    %cst_32 = arith.constant dense<0.000000e+00> : vector<8xf32>
    %52 = vector.multi_reduction <add>, %5, %cst_32 [1] : vector<8x128xf32> to vector<8xf32>
    %53 = vector.shape_cast %52 : vector<8xf32> to vector<8x1xf32>
    %54 = arith.addf %51, %53 : vector<8x1xf32>
    %c0_33 = arith.constant 0 : index
    %c0_34 = arith.constant 0 : index
    %c0_35 = arith.constant 0 : index
    %55 = vector.load %arg7[%c0_33, %c0_34, %c0_35] : memref<1x8x1xf32, #tpu.memory_space<vmem>>, vector<1x8x1xf32>
    %56 = vector.shape_cast %55 : vector<1x8x1xf32> to vector<8x1xf32>
    %57 = vector.shape_cast %54 : vector<8x1xf32> to vector<1x8x1xf32>
    tpu.vector_store %arg7[%c0_33, %c0_34, %c0_35], %57 {strides = array<i32>} : memref<1x8x1xf32, #tpu.memory_space<vmem>>, vector<1x8x1xf32>,
    return
  }
  func.func @transform_0(%arg0: i32, %arg1: i32) -> (i32, i32) {
    %c2_i32 = arith.constant 2 : i32
    %0 = arith.muli %arg0, %c2_i32 : i32
    %1 = arith.addi %0, %arg1 : i32
    %c0_i32 = arith.constant 0 : i32
    %c0_i32_0 = arith.constant 0 : i32
    return %c0_i32, %1 : i32, i32
  }
  func.func @transform_1(%arg0: i32, %arg1: i32) -> (i32, i32) {
    %c2_i32 = arith.constant 2 : i32
    %0 = arith.muli %arg0, %c2_i32 : i32
    %1 = arith.addi %0, %arg1 : i32
    %c0_i32 = arith.constant 0 : i32
    %c0_i32_0 = arith.constant 0 : i32
    return %c0_i32, %1 : i32, i32
  }
  func.func @transform_2(%arg0: i32, %arg1: i32) -> (i32, i32, i32) {
    %c0_i32 = arith.constant 0 : i32
    %c0_i32_0 = arith.constant 0 : i32
    %c0_i32_1 = arith.constant 0 : i32
    return %arg0, %c0_i32, %c0_i32_0 : i32, i32, i32
  }
  func.func @transform_3(%arg0: i32, %arg1: i32) -> (i32, i32, i32) {
    %c0_i32 = arith.constant 0 : i32
    %c0_i32_0 = arith.constant 0 : i32
    %c0_i32_1 = arith.constant 0 : i32
    return %arg0, %c0_i32, %c0_i32_0 : i32, i32, i32
  }
  func.func @transform_4(%arg0: i32, %arg1: i32) -> (i32, i32, i32) {
    %c0_i32 = arith.constant 0 : i32
    %c0_i32_0 = arith.constant 0 : i32
    %c0_i32_1 = arith.constant 0 : i32
    return %arg0, %c0_i32, %c0_i32_0 : i32, i32, i32
  }
  func.func @transform_5(%arg0: i32, %arg1: i32) -> (i32, i32, i32) {
    %c0_i32 = arith.constant 0 : i32
    %c0_i32_0 = arith.constant 0 : i32
    %c0_i32_1 = arith.constant 0 : i32
    return %arg0, %c0_i32, %c0_i32_0 : i32, i32, i32
  }
}

</mosaic_0001>

<llo_original>
// kernel: tpu_custom_call.1
$region0: #{tpu_custom_call.1}
  #allocation0 [shape = 'u32[]', space=smem, size = 0x4, offset = 0x4, fixed_abs, tag = 'smem constant byte address 0x4 - core index']
  #allocation1 [shape = 'u32[144,128]{1,0:T(1,128)}', space=vmem, size = 0x12000, scoped, tag = 'internal scratch']
  %s0 = inlined_call_operand.hbm [shape: f32[8,256], index: 0, kind: input, shape index: {}]
  %s1 = inlined_call_operand.hbm [shape: bf16[8,256], index: 1, kind: input, shape index: {}]
  %s2 = inlined_call_operand.vmem [shape: f32[1,8,1], index: 2, kind: output, shape index: {0}]
  %s3 = inlined_call_operand.vmem [shape: f32[1,8,1], index: 3, kind: output, shape index: {1}]
  %s4 = inlined_call_operand.vmem [shape: f32[1,8,1], index: 4, kind: output, shape index: {2}]
  %s5 = inlined_call_operand.vmem [shape: f32[1,8,1], index: 5, kind: output, shape index: {3}]
  %6 = xla_tuple %s2, %s3, %s4, %s5
  %s7 = sld [smem:[#allocation0]]
  $region77: #{tpu_custom_call.1} parent=0
    _
  %s9 = ssub.s32 1, %s7
  %s10 = scalar_select 0, %s9, %s7
  $region1: #{tpu_custom_call.1} parent=0
    #allocation2 [shape = 'u8[8192]{0}', space=vmem, size = 0x2000, scoped, tag = 'input window, operand 0']
    #allocation3 [shape = 's32[2]{0}', space=sflag, size = 0x8, scoped, tag = 'scoped memory for tpu_custom_call.1']
    #allocation4 [shape = 'u8[4096]{0}', space=vmem, size = 0x1000, scoped, tag = 'input window, operand 1']
    #allocation5 [shape = 's32[2]{0}', space=sflag, size = 0x8, scoped, tag = 'scoped memory for tpu_custom_call.1']
    %11 = vsyncpa [#allocation3], 0
    %s12 = scalar_lea.sflag [#allocation3], 1
    %13 = vsyncpa %s12, 0
    %14 = vsyncpa [#allocation5], 0
    %s15 = scalar_lea.sflag [#allocation5], 1
    %16 = vsyncpa %s15, 0
    loop: start=0, step=1, limit=4
    $region2: #{tpu_custom_call.1} parent=1 // loop_pre_header
      _
    $region3: #{tpu_custom_call.1} parent=1 // loop_header
      %s18 = sphi 0, %s22
      %p19 = scmp.ge.s32.totalorder %s18, 4
      %s25 = sphi 0, %s37
      %s26 = sphi 0, %s33
      %s27 = sphi 0, %s25
      %s28 = sphi 0, %s26
      %s29 = sphi 0, %s27
      %s30 = sphi 0, %s28
      %s44 = sphi 0, %s46
      %s47 = sphi 0, %s44
      %s48 = sphi 0, %s47
      %s64 = sphi 0, %s48
      %s74 = sphi 0, %s76
      %s77 = sphi 0, %s74
      %s78 = sphi 0, %s77
      %s94 = sphi 0, %s78
      %s100 = sphi 0, %s102
      %s103 = sphi 0, %s100
      %s104 = sphi 0, %s103
      %s120 = sphi 0, %s104
      %s126 = sphi 0, %s128
      %s129 = sphi 0, %s126
      %s130 = sphi 0, %s129
      %s146 = sphi 0, %s130
      %s152 = sphi 0, %s154
      %s155 = sphi 0, %s152
      %s156 = sphi 0, %s155
      %s172 = sphi 0, %s156
      %s178 = sphi 0, %s180
      %s181 = sphi 0, %s178
      %s182 = sphi 0, %s181
      %s198 = sphi 0, %s182
    $region4: #{tpu_custom_call.1} parent=1 // loop_header_branch
      %21 = sbr.rel (%p19) target = $region8
    $region5: #{tpu_custom_call.1} parent=1 // loop_body
      %s23 = ssub.s32 %s18, 1
      %s24 = ssub.s32 %s18, 2
      %s31 = sadd.s32 1, %s26
      %p32 = scmp.ge.s32.totalorder %s31, 2
      %s33 = scalar_select %p32, 0, %s31
      %s34 = sadd.s32 1, %s25
      %s35 = scalar_select %p32, %s34, %s25
      %p36 = scmp.ge.s32.totalorder %s35, 1
      %s37 = scalar_select %p36, 0, %s35
      %s38 = smul.u32 %s25, 2
      %s39 = sadd.s32 %s38, %s26
      %s40 = smul.u32 %s37, 2
      %s41 = sadd.s32 %s40, %s33
      %s42 = ssub.s32 %s39, %s41
      %p43 = scmp.eq.s32.totalorder %s42, 0
      %s45 = sadd.s32 %s44, 1
      %s46 = scalar_select %p43, %s44, %s45
      %p49 = pneg %p43
      %p50 = scmp.eq.s32.totalorder %s18, 1
      %p51 = por %p49, %p50
      %p52 = scmp.ne.s32.totalorder %s44, %s47
      %p53 = scmp.eq.s32.totalorder %s18, 0
      %p54 = por %p52, %p53
      %p55 = scmp.ne.s32.totalorder %s44, %s47
      %p56 = scmp.eq.s32.totalorder %s23, 1
      %p57 = por %p55, %p56
      %p58 = scmp.ne.s32.totalorder %s47, %s48
      %p59 = scmp.eq.s32.totalorder %s23, 0
      %p60 = por %p58, %p59
      %p61 = scmp.ne.s32.totalorder %s47, %s48
      %p62 = scmp.eq.s32.totalorder %s24, 1
      %p63 = por %p61, %p62
      %p65 = scmp.ne.s32.totalorder %s48, %s64
      %p66 = scmp.eq.s32.totalorder %s24, 0
      %p67 = por %p65, %p66
      %s68 = smul.u32 %s25, 2
      %s69 = sadd.s32 %s68, %s26
      %s70 = smul.u32 %s37, 2
      %s71 = sadd.s32 %s70, %s33
      %s72 = ssub.s32 %s69, %s71
      %p73 = scmp.eq.s32.totalorder %s72, 0
      %s75 = sadd.s32 %s74, 1
      %s76 = scalar_select %p73, %s74, %s75
      %p79 = pneg %p73
      %p80 = scmp.eq.s32.totalorder %s18, 1
      %p81 = por %p79, %p80
      %p82 = scmp.ne.s32.totalorder %s74, %s77
      %p83 = scmp.eq.s32.totalorder %s18, 0
      %p84 = por %p82, %p83
      %p85 = scmp.ne.s32.totalorder %s74, %s77
      %p86 = scmp.eq.s32.totalorder %s23, 1
      %p87 = por %p85, %p86
      %p88 = scmp.ne.s32.totalorder %s77, %s78
      %p89 = scmp.eq.s32.totalorder %s23, 0
      %p90 = por %p88, %p89
      %p91 = scmp.ne.s32.totalorder %s77, %s78
      %p92 = scmp.eq.s32.totalorder %s24, 1
      %p93 = por %p91, %p92
      %p95 = scmp.ne.s32.totalorder %s78, %s94
      %p96 = scmp.eq.s32.totalorder %s24, 0
      %p97 = por %p95, %p96
      %s98 = ssub.s32 %s25, %s37
      %p99 = scmp.eq.s32.totalorder %s98, 0
      %s101 = sadd.s32 %s100, 1
      %s102 = scalar_select %p99, %s100, %s101
      %p105 = pneg %p99
      %p106 = scmp.eq.s32.totalorder %s18, 1
      %p107 = por %p105, %p106
      %p108 = scmp.ne.s32.totalorder %s100, %s103
      %p109 = scmp.eq.s32.totalorder %s18, 0
      %p110 = por %p108, %p109
      %p111 = scmp.ne.s32.totalorder %s100, %s103
      %p112 = scmp.eq.s32.totalorder %s23, 1
      %p113 = por %p111, %p112
      %p114 = scmp.ne.s32.totalorder %s103, %s104
      %p115 = scmp.eq.s32.totalorder %s23, 0
      %p116 = por %p114, %p115
      %p117 = scmp.ne.s32.totalorder %s103, %s104
      %p118 = scmp.eq.s32.totalorder %s24, 1
      %p119 = por %p117, %p118
      %p121 = scmp.ne.s32.totalorder %s104, %s120
      %p122 = scmp.eq.s32.totalorder %s24, 0
      %p123 = por %p121, %p122
      %s124 = ssub.s32 %s25, %s37
      %p125 = scmp.eq.s32.totalorder %s124, 0
      %s127 = sadd.s32 %s126, 1
      %s128 = scalar_select %p125, %s126, %s127
      %p131 = pneg %p125
      %p132 = scmp.eq.s32.totalorder %s18, 1
      %p133 = por %p131, %p132
      %p134 = scmp.ne.s32.totalorder %s126, %s129
      %p135 = scmp.eq.s32.totalorder %s18, 0
      %p136 = por %p134, %p135
      %p137 = scmp.ne.s32.totalorder %s126, %s129
      %p138 = scmp.eq.s32.totalorder %s23, 1
      %p139 = por %p137, %p138
      %p140 = scmp.ne.s32.totalorder %s129, %s130
      %p141 = scmp.eq.s32.totalorder %s23, 0
      %p142 = por %p140, %p141
      %p143 = scmp.ne.s32.totalorder %s129, %s130
      %p144 = scmp.eq.s32.totalorder %s24, 1
      %p145 = por %p143, %p144
      %p147 = scmp.ne.s32.totalorder %s130, %s146
      %p148 = scmp.eq.s32.totalorder %s24, 0
      %p149 = por %p147, %p148
      %s150 = ssub.s32 %s25, %s37
      %p151 = scmp.eq.s32.totalorder %s150, 0
      %s153 = sadd.s32 %s152, 1
      %s154 = scalar_select %p151, %s152, %s153
      %p157 = pneg %p151
      %p158 = scmp.eq.s32.totalorder %s18, 1
      %p159 = por %p157, %p158
      %p160 = scmp.ne.s32.totalorder %s152, %s155
      %p161 = scmp.eq.s32.totalorder %s18, 0
      %p162 = por %p160, %p161
      %p163 = scmp.ne.s32.totalorder %s152, %s155
      %p164 = scmp.eq.s32.totalorder %s23, 1
      %p165 = por %p163, %p164
      %p166 = scmp.ne.s32.totalorder %s155, %s156
      %p167 = scmp.eq.s32.totalorder %s23, 0
      %p168 = por %p166, %p167
      %p169 = scmp.ne.s32.totalorder %s155, %s156
      %p170 = scmp.eq.s32.totalorder %s24, 1
      %p171 = por %p169, %p170
      %p173 = scmp.ne.s32.totalorder %s156, %s172
      %p174 = scmp.eq.s32.totalorder %s24, 0
      %p175 = por %p173, %p174
      %s176 = ssub.s32 %s25, %s37
      %p177 = scmp.eq.s32.totalorder %s176, 0
      %s179 = sadd.s32 %s178, 1
      %s180 = scalar_select %p177, %s178, %s179
      %p183 = pneg %p177
      %p184 = scmp.eq.s32.totalorder %s18, 1
      %p185 = por %p183, %p184
      %p186 = scmp.ne.s32.totalorder %s178, %s181
      %p187 = scmp.eq.s32.totalorder %s18, 0
      %p188 = por %p186, %p187
      %p189 = scmp.ne.s32.totalorder %s178, %s181
      %p190 = scmp.eq.s32.totalorder %s23, 1
      %p191 = por %p189, %p190
      %p192 = scmp.ne.s32.totalorder %s181, %s182
      %p193 = scmp.eq.s32.totalorder %s23, 0
      %p194 = por %p192, %p193
      %p195 = scmp.ne.s32.totalorder %s181, %s182
      %p196 = scmp.eq.s32.totalorder %s24, 1
      %p197 = por %p195, %p196
      %p199 = scmp.ne.s32.totalorder %s182, %s198
      %p200 = scmp.eq.s32.totalorder %s24, 0
      %p201 = por %p199, %p200
      %p202 = scmp.le.s32.totalorder 1, %s18
      %p203 = scmp.lt.s32.totalorder %s18, 3
      %p204 = pnand %p202, %p203
      %p205 = pneg %p204
      // Predicated region
      $region9: #{tpu_custom_call.1} parent=5 // pred_check
        _
      $region10: #{tpu_custom_call.1} parent=5 // pred_check_branch
        %207 = sbr.rel (%p204) target = $region12
      $region11: #{tpu_custom_call.1} parent=5 // pred_region
        %s208 = ssub.s32 %s18, 1
      $region12: #{tpu_custom_call.1} parent=5 // pred_fallthru
        _
      %p209 = scmp.lt.s32.totalorder %s18, 2
      // Predicated region
      $region13: #{tpu_custom_call.1} parent=5 // pred_check
        %p210 = pneg %p209
      $region14: #{tpu_custom_call.1} parent=5 // pred_check_branch
        %212 = sbr.rel (%p210) target = $region16
      $region15: #{tpu_custom_call.1} parent=5 // pred_region
        // Predicated region
        $region17: #{tpu_custom_call.1} parent=15 // pred_check
          %p213 = pneg %p54
        $region18: #{tpu_custom_call.1} parent=15 // pred_check_branch
          %215 = sbr.rel (%p213) target = $region20
        $region19: #{tpu_custom_call.1} parent=15 // pred_region
          %s216 = sand.u32 %s44, 1
          %s217 = scalar_lea.sflag [#allocation3], %s216
          %s218 = sand.u32 %s44, 1
          %s219 = smul.addr %s218, 8
          %s220 = scalar_lea.vmem [#allocation2], %s219
          %s221 = smul.u32 %s25, 2
          %s222 = sadd.s32 %s221, %s26
          %s224 = ssub.s32 128, 128
          %225 = vsyncadd %s217, %s224
          %s226 = smul.addr %s222, 128
          %s227 = scalar_lea.hbm %s0, %s226
          %s229 = sshll.u32 %s220, 4
          %s230 = int_to_ptr.vmem [resolvable:$true] %s229
          %232 = dma.hbm_to_vmem [thread:$0]  %s227, 128, %s230, %s217
        $region20: #{tpu_custom_call.1} parent=15 // pred_fallthru
          _
        // Predicated region
        $region21: #{tpu_custom_call.1} parent=15 // pred_check
          %p233 = pneg %p84
        $region22: #{tpu_custom_call.1} parent=15 // pred_check_branch
          %235 = sbr.rel (%p233) target = $region24
        $region23: #{tpu_custom_call.1} parent=15 // pred_region
          %s236 = sand.u32 %s74, 1
          %s237 = scalar_lea.sflag [#allocation5], %s236
          %s238 = sand.u32 %s74, 1
          %s239 = smul.addr %s238, 4
          %s240 = scalar_lea.vmem [#allocation4], %s239
          %s241 = smul.u32 %s25, 2
          %s242 = sadd.s32 %s241, %s26
          %s244 = ssub.s32 64, 64
          %245 = vsyncadd %s237, %s244
          %s246 = smul.addr %s242, 64
          %s247 = scalar_lea.hbm %s1, %s246
          %s249 = sshll.u32 %s240, 4
          %s250 = int_to_ptr.vmem [resolvable:$true] %s249
          %252 = dma.hbm_to_vmem [thread:$0]  %s247, 64, %s250, %s237
        $region24: #{tpu_custom_call.1} parent=15 // pred_fallthru
          _
      $region16: #{tpu_custom_call.1} parent=5 // pred_fallthru
        _
      %p253 = scmp.le.s32.totalorder 1, %s18
      %p254 = scmp.lt.s32.totalorder %s18, 3
      %p255 = pnand %p253, %p254
      %p256 = pneg %p255
      // Predicated region
      $region25: #{tpu_custom_call.1} parent=5 // pred_check
        _
      $region26: #{tpu_custom_call.1} parent=5 // pred_check_branch
        %258 = sbr.rel (%p255) target = $region28
      $region27: #{tpu_custom_call.1} parent=5 // pred_region
        %s259 = ssub.s32 %s18, 1
        %s260 = sand.u32 %s47, 1
        %s261 = scalar_lea.sflag [#allocation3], %s260
        %s262 = sand.u32 %s47, 1
        %s263 = smul.addr %s262, 8
        %s264 = scalar_lea.vmem [#allocation2], %s263
        // Predicated region
        $region29: #{tpu_custom_call.1} parent=27 // pred_check
          %p265 = pneg %p60
        $region30: #{tpu_custom_call.1} parent=27 // pred_check_branch
          %267 = sbr.rel (%p265) target = $region32
        $region31: #{tpu_custom_call.1} parent=27 // pred_region
          %268 = dma.done %s261, 128
        $region32: #{tpu_custom_call.1} parent=27 // pred_fallthru
          _
        %s269 = sand.u32 %s77, 1
        %s270 = scalar_lea.sflag [#allocation5], %s269
        %s271 = sand.u32 %s77, 1
        %s272 = smul.addr %s271, 4
        %s273 = scalar_lea.vmem [#allocation4], %s272
        // Predicated region
        $region33: #{tpu_custom_call.1} parent=27 // pred_check
          %p274 = pneg %p90
        $region34: #{tpu_custom_call.1} parent=27 // pred_check_branch
          %276 = sbr.rel (%p274) target = $region36
        $region35: #{tpu_custom_call.1} parent=27 // pred_region
          %277 = dma.done %s270, 64
        $region36: #{tpu_custom_call.1} parent=27 // pred_fallthru
          _
        %s278 = sand.u32 %s47, 1
        %s279 = scalar_lea.sflag [#allocation3], %s278
        %s280 = sand.u32 %s47, 1
        %s281 = smul.addr %s280, 8
        %s282 = scalar_lea.vmem [#allocation2], %s281
        %p283 = pneg %p60
        %p284 = pneg %p57
        %s285 = sand.u32 %s77, 1
        %s286 = scalar_lea.sflag [#allocation5], %s285
        %s287 = sand.u32 %s77, 1
        %s288 = smul.addr %s287, 4
        %s289 = scalar_lea.vmem [#allocation4], %s288
        %p290 = pneg %p90
        %p291 = pneg %p87
        %p292 = pneg %p116
        %p293 = pneg %p113
        %p294 = scmp.lt.s32.totalorder %s27, 0
        %s295 = scalar_select %p294, %s27, 0
        %s296 = smul.addr %s295, 8
        %s297 = scalar_lea.vmem %s2, %s296
        %p298 = pneg %p142
        %p299 = pneg %p139
        %p300 = scmp.lt.s32.totalorder %s27, 0
        %s301 = scalar_select %p300, %s27, 0
        %s302 = smul.addr %s301, 8
        %s303 = scalar_lea.vmem %s3, %s302
        %p304 = pneg %p168
        %p305 = pneg %p165
        %p306 = scmp.lt.s32.totalorder %s27, 0
        %s307 = scalar_select %p306, %s27, 0
        %s308 = smul.addr %s307, 8
        %s309 = scalar_lea.vmem %s4, %s308
        %p310 = pneg %p194
        %p311 = pneg %p191
        %p312 = scmp.lt.s32.totalorder %s27, 0
        %s313 = scalar_select %p312, %s27, 0
        %s314 = smul.addr %s313, 8
        %s315 = scalar_lea.vmem %s5, %s314
        %s316 = smul.u32 %s27, 2
        %s317 = sadd.s32 %s316, %s28
        %s318 = smul.u32 %s27, 2
        %s319 = sadd.s32 %s318, %s28
        %p320 = scmp.lt.s32.totalorder %s27, 0
        %s321 = scalar_select %p320, %s27, 0
        %s322 = smul.addr %s321, 8
        %s323 = scalar_lea.vmem %s2, %s322
        %p324 = scmp.lt.s32.totalorder %s27, 0
        %s325 = scalar_select %p324, %s27, 0
        %s326 = smul.addr %s325, 8
        %s327 = scalar_lea.vmem %s3, %s326
        %p328 = scmp.lt.s32.totalorder %s27, 0
        %s329 = scalar_select %p328, %s27, 0
        %s330 = smul.addr %s329, 8
        %s331 = scalar_lea.vmem %s4, %s330
        %p332 = scmp.lt.s32.totalorder %s27, 0
        %s333 = scalar_select %p332, %s27, 0
        %s334 = smul.addr %s333, 8
        %s335 = scalar_lea.vmem %s5, %s334
        %p336 = scmp.eq.s32.totalorder %s28, 0
        // Predicated region
        $region37: #{tpu_custom_call.1} parent=27 // pred_check
          %p337 = pneg %p336
        $region38: #{tpu_custom_call.1} parent=27 // pred_check_branch
          %339 = sbr.rel (%p337) target = $region40
        $region39: #{tpu_custom_call.1} parent=27 // pred_region
          %vm340 = vcmask 7168
          %341 = vst.msk [vmem:[%s323] sm:$0xff] %vm340, 0.0
          %342 = vst.msk [vmem:[%s327] sm:$0xff] %vm340, 0.0
          %343 = vst.msk [vmem:[%s331] sm:$0xff] %vm340, 0.0
          %344 = vst.msk [vmem:[%s335] sm:$0xff] %vm340, 0.0
        $region40: #{tpu_custom_call.1} parent=27 // pred_fallthru
          _
        %v345 = vld [vmem:[%s264] sm:$0xff]
        %v346 = vld [vmem:[%s273] sm:$0xf]
        %v347 = vunpack.c.l.bf16 %v346
        %v348 = vand.u32 2147483647, %v345
        %v349 = vsub.f32 0.0, %v348
        %v350 = vmul.f32 %v349, 1.442695
        %v351 = vpow.pop %v350
        %v352 = vadd.f32 %v351, 1.0
        %v353 = vrcp.pop %v352
        %vm354 = vcmp.ge.f32.partialorder %v345, 0.0
        %v355 = vmul.f32 %v351, %v353
        %v356 = vsel %vm354, %v353, %v355
        %v357 = vmax.f32 %v345, 0.0
        %v358 = vmul.f32 %v347, %v345
        %v359 = vsub.f32 %v357, %v358
        %v360 = vlog2.pop %v352
        %v361 = vmul.f32 %v360, 0.6931472
        %v362 = vadd.f32 %v359, %v361
        %v363 = vld [vmem:[%s323] sm:$0xff]
        %364 = vadd.xlane.f32.xlu0 %v362
        %v365 = vpop.xlane.xlu0 %364
        %v366 = vadd.f32 %v363, %v365
        %vm367 = vcmask 7168
        %368 = vst.msk [vmem:[%s323] sm:$0xff] %vm367, %v366
        %v369 = vld [vmem:[%s327] sm:$0xff]
        %v370 = vmul.f32 %v356, %v347
        %371 = vadd.xlane.f32.xlu0 %v370
        %v372 = vpop.xlane.xlu0 %371
        %v373 = vadd.f32 %v369, %v372
        %374 = vst.msk [vmem:[%s327] sm:$0xff] %vm367, %v373
        %v375 = vld [vmem:[%s331] sm:$0xff]
        %376 = vadd.xlane.f32.xlu0 %v356
        %v377 = vpop.xlane.xlu0 %376
        %v378 = vadd.f32 %v375, %v377
        %379 = vst.msk [vmem:[%s331] sm:$0xff] %vm367, %v378
        %v380 = vld [vmem:[%s335] sm:$0xff]
        %381 = vadd.xlane.f32.xlu0 %v347
        %v382 = vpop.xlane.xlu0 %381
        %v383 = vadd.f32 %v380, %v382
        %384 = vst.msk [vmem:[%s335] sm:$0xff] %vm367, %v383
        %p385 = scmp.lt.s32.totalorder %s27, 0
        %s386 = scalar_select %p385, %s27, 0
        %s387 = smul.addr %s386, 8
        %s388 = scalar_lea.vmem %s2, %s387
        %p389 = scmp.lt.s32.totalorder %s27, 0
        %s390 = scalar_select %p389, %s27, 0
        %s391 = smul.addr %s390, 8
        %s392 = scalar_lea.vmem %s3, %s391
        %p393 = scmp.lt.s32.totalorder %s27, 0
        %s394 = scalar_select %p393, %s27, 0
        %s395 = smul.addr %s394, 8
        %s396 = scalar_lea.vmem %s4, %s395
        %p397 = scmp.lt.s32.totalorder %s27, 0
        %s398 = scalar_select %p397, %s27, 0
        %s399 = smul.addr %s398, 8
        %s400 = scalar_lea.vmem %s5, %s399
        // Predicated region
        $region41: #{tpu_custom_call.1} parent=27 // pred_check
          %p401 = pneg %p113
        $region42: #{tpu_custom_call.1} parent=27 // pred_check_branch
          %403 = sbr.rel (%p401) target = $region44
        $region43: #{tpu_custom_call.1} parent=27 // pred_region
          _
        $region44: #{tpu_custom_call.1} parent=27 // pred_fallthru
          _
        // Predicated region
        $region45: #{tpu_custom_call.1} parent=27 // pred_check
          %p404 = pneg %p139
        $region46: #{tpu_custom_call.1} parent=27 // pred_check_branch
          %406 = sbr.rel (%p404) target = $region48
        $region47: #{tpu_custom_call.1} parent=27 // pred_region
          _
        $region48: #{tpu_custom_call.1} parent=27 // pred_fallthru
          _
        // Predicated region
        $region49: #{tpu_custom_call.1} parent=27 // pred_check
          %p407 = pneg %p165
        $region50: #{tpu_custom_call.1} parent=27 // pred_check_branch
          %409 = sbr.rel (%p407) target = $region52
        $region51: #{tpu_custom_call.1} parent=27 // pred_region
          _
        $region52: #{tpu_custom_call.1} parent=27 // pred_fallthru
          _
        // Predicated region
        $region53: #{tpu_custom_call.1} parent=27 // pred_check
          %p410 = pneg %p191
        $region54: #{tpu_custom_call.1} parent=27 // pred_check_branch
          %412 = sbr.rel (%p410) target = $region56
        $region55: #{tpu_custom_call.1} parent=27 // pred_region
          _
        $region56: #{tpu_custom_call.1} parent=27 // pred_fallthru
          _
        // Predicated region
        $region57: #{tpu_custom_call.1} parent=27 // pred_check
          %p413 = pneg %p113
        $region58: #{tpu_custom_call.1} parent=27 // pred_check_branch
          %415 = sbr.rel (%p413) target = $region60
        $region59: #{tpu_custom_call.1} parent=27 // pred_region
          %p416 = scmp.lt.s32.totalorder %s27, 0
          %s417 = scalar_select %p416, %s27, 0
          %s418 = smul.addr %s417, 8
          %s419 = scalar_lea.vmem %s2, %s418
        $region60: #{tpu_custom_call.1} parent=27 // pred_fallthru
          _
        // Predicated region
        $region61: #{tpu_custom_call.1} parent=27 // pred_check
          %p420 = pneg %p139
        $region62: #{tpu_custom_call.1} parent=27 // pred_check_branch
          %422 = sbr.rel (%p420) target = $region64
        $region63: #{tpu_custom_call.1} parent=27 // pred_region
          %p423 = scmp.lt.s32.totalorder %s27, 0
          %s424 = scalar_select %p423, %s27, 0
          %s425 = smul.addr %s424, 8
          %s426 = scalar_lea.vmem %s3, %s425
        $region64: #{tpu_custom_call.1} parent=27 // pred_fallthru
          _
        // Predicated region
        $region65: #{tpu_custom_call.1} parent=27 // pred_check
          %p427 = pneg %p165
        $region66: #{tpu_custom_call.1} parent=27 // pred_check_branch
          %429 = sbr.rel (%p427) target = $region68
        $region67: #{tpu_custom_call.1} parent=27 // pred_region
          %p430 = scmp.lt.s32.totalorder %s27, 0
          %s431 = scalar_select %p430, %s27, 0
          %s432 = smul.addr %s431, 8
          %s433 = scalar_lea.vmem %s4, %s432
        $region68: #{tpu_custom_call.1} parent=27 // pred_fallthru
          _
        // Predicated region
        $region69: #{tpu_custom_call.1} parent=27 // pred_check
          %p434 = pneg %p191
        $region70: #{tpu_custom_call.1} parent=27 // pred_check_branch
          %436 = sbr.rel (%p434) target = $region72
        $region71: #{tpu_custom_call.1} parent=27 // pred_region
          %p437 = scmp.lt.s32.totalorder %s27, 0
          %s438 = scalar_select %p437, %s27, 0
          %s439 = smul.addr %s438, 8
          %s440 = scalar_lea.vmem %s5, %s439
        $region72: #{tpu_custom_call.1} parent=27 // pred_fallthru
          _
      $region28: #{tpu_custom_call.1} parent=5 // pred_fallthru
        _
      %p441 = scmp.le.s32.totalorder 2, %s18
      // Predicated region
      $region73: #{tpu_custom_call.1} parent=5 // pred_check
        %p442 = pneg %p441
      $region74: #{tpu_custom_call.1} parent=5 // pred_check_branch
        %444 = sbr.rel (%p442) target = $region76
      $region75: #{tpu_custom_call.1} parent=5 // pred_region
        %s445 = ssub.s32 %s18, 2
      $region76: #{tpu_custom_call.1} parent=5 // pred_fallthru
        _
    $region6: #{tpu_custom_call.1} parent=1 // loop_footer
      %s22 = sadd.s32 1, %s18
    $region7: #{tpu_custom_call.1} parent=1 // loop_footer_branch
      %17 = sbr.rel target = $region3
    $region8: #{tpu_custom_call.1} parent=1 // loop_exit
      _
    %446 = vsyncpa [#allocation3], 1
    %s447 = scalar_lea.sflag [#allocation3], 1
    %448 = vsyncpa %s447, 1
    %449 = vsyncpa [#allocation5], 1
    %s450 = scalar_lea.sflag [#allocation5], 1
    %451 = vsyncpa %s450, 1

</llo_original>
